<compile_context>
chip_gen: v7x
topology: tpu7x:2x2x1
jax: 0.10.0
libtpu: 0.0.40
codegen_flags: <defaults>
</compile_context>

<pallas_src>
import functools

import jax
import jax.numpy as jnp
from jax import lax
from jax.experimental import pallas as pl
from jax.experimental.pallas import tpu as pltpu


def _round_up(n, m):
    return ((n + m - 1) // m) * m


def _choose_tile(B, hw, x_itemsize):
    """Pick (TILE_B, padded_batch).

    Small batches -> one tile padded to a multiple of 8 (output row equals the
    full lane extent, so no 128 constraint).  Larger batches -> the largest
    128-multiple tile that (a) keeps the double-buffered x tile inside a
    conservative VMEM budget (sized for v7x's 64 MiB VMEM / 32 MiB scoped
    default; v5e/v6e have far more headroom), (b) divides the minimally padded
    batch (pad only to a 128 multiple, never to a tile multiple), and (c) gives
    >= 2 grid steps so both v7x TensorCores are used.
    """
    budget = 12 * 1024 * 1024                    # bytes for the 2x-buffered x tile
    cap = budget // (2 * hw * x_itemsize)
    cap = max(128, min(1024, (cap // 128) * 128))

    b8 = _round_up(max(B, 1), 8)
    if b8 < 256:
        # Single tile; padding is at most 7 rows.
        return b8, b8

    b_pad = _round_up(B, 128)
    tb = min(cap, max(128, ((b_pad // 2) // 128) * 128))
    while tb > 128 and b_pad % tb != 0:
        tb -= 128
    return max(tb, 128), b_pad


def _discriminator_kernel(x_ref, lab_ref,
                          w1_ref, e1_ref, b1_ref,
                          w2_ref, b2_ref,
                          w3_ref, b3_ref,
                          w4_ref, b4_ref,
                          out_ref):
    """(Linear -> LeakyReLU(0.2)) x3 -> Linear -> Sigmoid, lane-padded to 128.

    Output is a packed lane-dense (1, TILE_B) row of sigmoid probabilities.
    """
    f32 = jnp.float32
    bf16 = jnp.bfloat16
    tb = x_ref.shape[0]
    cp = e1_ref.shape[0]                      # padded class dim (>=128)

    def leaky(v):
        # max(v, 0.2*v) == LeakyReLU(0.2); one vmul + vmax (no compare/select).
        return jnp.maximum(v, 0.2 * v)

    # One-hot over the (padded) class dim; padded rows of e1 are zero so they
    # are never selected.
    lab = lab_ref[...]                        # (TB, 1) int32
    onehot = (lab == lax.broadcasted_iota(jnp.int32, (tb, cp), 1)).astype(bf16)

    # Layer 1: image part + label-embedding contribution (pre-folded table).
    x = x_ref[...].astype(bf16)
    h = jnp.dot(x, w1_ref[...], preferred_element_type=f32)
    h = h + jnp.dot(onehot, e1_ref[...], preferred_element_type=f32)
    h = leaky(h + b1_ref[...])
    # TODO(synk): Dropout(0.3) is identity here (inference mode).

    # Layer 2.
    h = jnp.dot(h.astype(bf16), w2_ref[...], preferred_element_type=f32)
    h = leaky(h + b2_ref[...])

    # Layer 3.
    h = jnp.dot(h.astype(bf16), w3_ref[...], preferred_element_type=f32)
    h = leaky(h + b3_ref[...])

    # Final (h3p -> 1) layer fused with the output transpose: a single M=1 MXU
    # matmul w4 (1, h3p) @ h.T (h3p, TB) produces a lane-dense (1, TB) row.
    logit = jnp.dot(w4_ref[...], h.astype(bf16).T,
                    preferred_element_type=f32)            # (1, TB)
    logit = logit + b4_ref[...]                            # (1, 1) bias broadcast

    # Overflow-safe sigmoid: exp on EUP, reciprocal on EUP (approx), then clamp
    # (approx reciprocal can overshoot 1 by a few ulps).
    z = jnp.exp(-jnp.abs(logit))
    inv = pl.reciprocal(1.0 + z, approx=True)
    sig = jnp.where(logit >= 0, inv, z * inv)
    out_ref[...] = jnp.clip(sig, 0.0, 1.0)


def prepare_params(params, img_size, class_num, layer_sizes):
    """Fold the label-embedding into layer 1 and zero-pad to 128-lane widths.

    Note: w1 rows stay at hw = img_size**2; if hw is not a 128 multiple
    (e.g. 28x28 = 784) pad the flattened image in the data pipeline instead of
    per-call (a wrapper-side pad would re-copy x in HBM)."""
    hw = img_size * img_size
    h1, h2, h3 = layer_sizes
    h1p, h2p, h3p = (_round_up(h, 128) for h in (h1, h2, h3))
    cp = _round_up(class_num, 128)

    def pad2(a, rows, cols):
        return jnp.pad(a, ((0, rows - a.shape[0]), (0, cols - a.shape[1])))

    w1 = params["w1"]                              # (hw + class_num, h1)
    w1_img = w1[:hw]                               # (hw, h1)
    w1_lab = w1[hw:]                               # (class_num, h1)
    e1 = params["label_emb"] @ w1_lab              # (class_num, h1)

    return {
        "w1": pad2(w1_img, hw, h1p).astype(jnp.bfloat16),
        "e1": pad2(e1, cp, h1p).astype(jnp.bfloat16),
        "b1": pad2(params["b1"], 1, h1p).astype(jnp.float32),
        "w2": pad2(params["w2"], h1p, h2p).astype(jnp.bfloat16),
        "b2": pad2(params["b2"], 1, h2p).astype(jnp.float32),
        "w3": pad2(params["w3"], h2p, h3p).astype(jnp.bfloat16),
        "b3": pad2(params["b3"], 1, h3p).astype(jnp.float32),
        "w4": pad2(params["w4"].T, 1, h3p).astype(jnp.bfloat16),  # (1, h3p) row
        "b4": params["b4"].reshape(1, 1).astype(jnp.float32),
    }


def discriminator_forward(x, labels, prepared, img_size):
    """x: (B, 1, img_size, img_size) float32 or bfloat16; labels: (B,) int."""
    B = x.shape[0]
    hw = img_size * img_size
    # Keep the producer's dtype (f32 or bf16) — the kernel casts to bf16 for the
    # MXU, so no standalone XLA cast pass is inserted here.
    x_flat = x.reshape(B, hw)
    labels2d = labels.reshape(B, 1).astype(jnp.int32)

    tb, b_pad = _choose_tile(B, hw, x_flat.dtype.itemsize)
    if b_pad != B:
        # TODO(synk): for large unaligned B this jnp.pad re-copies x in HBM once;
        # feed batch sizes that are multiples of 8 (or 128 when B >= 256) to skip it.
        x_flat = jnp.pad(x_flat, ((0, b_pad - B), (0, 0)))
        labels2d = jnp.pad(labels2d, ((0, b_pad - B), (0, 0)))
    nb = b_pad // tb

    p = prepared
    full = lambda a: pl.BlockSpec(a.shape, lambda i: (0, 0))

    out = pl.pallas_call(
        _discriminator_kernel,
        out_shape=jax.ShapeDtypeStruct((1, b_pad), jnp.float32),
        grid=(nb,),
        in_specs=[
            pl.BlockSpec((tb, hw), lambda i: (i, 0)),   # x_flat tile
            pl.BlockSpec((tb, 1), lambda i: (i, 0)),    # labels tile
            full(p["w1"]), full(p["e1"]), full(p["b1"]),
            full(p["w2"]), full(p["b2"]),
            full(p["w3"]), full(p["b3"]),
            full(p["w4"]), full(p["b4"]),
        ],
        # Packed lane-dense output row: each grid step writes its own tb lanes.
        out_specs=pl.BlockSpec((1, tb), lambda i: (0, i)),
        compiler_params=pltpu.CompilerParams(
            dimension_semantics=("parallel",),
            vmem_limit_bytes=32 * 1024 * 1024),
    )(x_flat, labels2d,
      p["w1"], p["e1"], p["b1"],
      p["w2"], p["b2"],
      p["w3"], p["b3"],
      p["w4"], p["b4"])

    # PyTorch: out.squeeze()  -> (B,)  (scalar if B == 1)
    return jnp.squeeze(out.reshape(-1)[:B])


def init_params(key, discriminator_layer_size, img_size, class_num):
    """Deterministic synthetic parameter init (shapes match the nn.Module).

    Linear weights stored as (in_features, out_features); biases as (1, out)."""
    in_dim = img_size * img_size + class_num
    dims = [in_dim] + list(discriminator_layer_size) + [1]
    keys = jax.random.split(key, 2 * (len(dims) - 1) + 1)

    params = {"label_emb": jax.random.normal(keys[0], (class_num, class_num),
                                             dtype=jnp.float32)}
    for i in range(len(dims) - 1):
        fan_in, fan_out = dims[i], dims[i + 1]
        scale = 1.0 / jnp.sqrt(jnp.float32(fan_in))
        w = jax.random.uniform(keys[1 + 2 * i], (fan_in, fan_out),
                               minval=-scale, maxval=scale, dtype=jnp.float32)
        b = jax.random.uniform(keys[2 + 2 * i], (1, fan_out),
                               minval=-scale, maxval=scale, dtype=jnp.float32)
        params[f"w{i + 1}"] = w
        params[f"b{i + 1}"] = b
    return params


def reference_forward(x, labels, params, img_size):
    """Pure-JAX f32 reference matching the PyTorch module."""
    B = x.shape[0]
    x_flat = x.reshape(B, img_size * img_size)
    c = params["label_emb"][labels]
    h = jnp.concatenate([x_flat, c], axis=1)
    for i in (1, 2, 3):
        h = h @ params[f"w{i}"] + params[f"b{i}"]
        h = jnp.where(h > 0, h, 0.2 * h)
    logit = h @ params["w4"] + params["b4"]
    return jnp.squeeze(jax.nn.sigmoid(logit))


if __name__ == "__main__":
    img_size = 16
    class_num = 4
    discriminator_layer_size = (64, 32, 32)
    batch = 2

    key = jax.random.PRNGKey(0)
    k_params, k_x, k_lab = jax.random.split(key, 3)

    params = init_params(k_params, discriminator_layer_size, img_size, class_num)
    prepared = prepare_params(params, img_size, class_num, discriminator_layer_size)

    x = jax.random.normal(k_x, (batch, 1, img_size, img_size), dtype=jnp.float32)
    labels = jax.random.randint(k_lab, (batch,), 0, class_num, dtype=jnp.int32)

    fwd = jax.jit(functools.partial(discriminator_forward, img_size=img_size))
    out = fwd(x, labels, prepared)
    jax.block_until_ready(out)

    ref = reference_forward(x, labels, params, img_size)

    assert out.shape == (batch,)
    assert bool(jnp.all((out >= 0.0) & (out <= 1.0)))
    assert bool(jnp.allclose(out, ref, atol=5e-2)), (out, ref)
    print("KERNEL_OK")
</pallas_src>

<mosaic_0001>
module attributes {stable_mosaic.version = 11 : i64} {
  func.func @_discriminator_kernel(%arg0: i32, %arg1: memref<8x256xf32, #tpu.memory_space<vmem>>, %arg2: memref<8x1xi32, #tpu.memory_space<vmem>>, %arg3: memref<256x128xbf16, #tpu.memory_space<vmem>>, %arg4: memref<128x128xbf16, #tpu.memory_space<vmem>>, %arg5: memref<1x128xf32, #tpu.memory_space<vmem>>, %arg6: memref<128x128xbf16, #tpu.memory_space<vmem>>, %arg7: memref<1x128xf32, #tpu.memory_space<vmem>>, %arg8: memref<128x128xbf16, #tpu.memory_space<vmem>>, %arg9: memref<1x128xf32, #tpu.memory_space<vmem>>, %arg10: memref<1x128xbf16, #tpu.memory_space<vmem>>, %arg11: memref<1x1xf32, #tpu.memory_space<vmem>>, %arg12: memref<1x8xf32, #tpu.memory_space<vmem>>) attributes {dimension_semantics = [#tpu.dimension_semantics<parallel>], iteration_bounds = array<i64: 1>, scalar_prefetch = 0 : i64, scratch_operands = 0 : i64, tpu.core_type = #tpu.core_type<tc>, window_params = [{transform_indices = @transform_0, window_bounds = array<i64: 8, 256>}, {transform_indices = @transform_1, window_bounds = array<i64: 8, 1>}, {pipeline_mode = #tpu.pipeline_mode<synchronous>, transform_indices = @transform_2, window_bounds = array<i64: 256, 128>}, {pipeline_mode = #tpu.pipeline_mode<synchronous>, transform_indices = @transform_3, window_bounds = array<i64: 128, 128>}, {pipeline_mode = #tpu.pipeline_mode<synchronous>, transform_indices = @transform_4, window_bounds = array<i64: 1, 128>}, {pipeline_mode = #tpu.pipeline_mode<synchronous>, transform_indices = @transform_5, window_bounds = array<i64: 128, 128>}, {pipeline_mode = #tpu.pipeline_mode<synchronous>, transform_indices = @transform_6, window_bounds = array<i64: 1, 128>}, {pipeline_mode = #tpu.pipeline_mode<synchronous>, transform_indices = @transform_7, window_bounds = array<i64: 128, 128>}, {pipeline_mode = #tpu.pipeline_mode<synchronous>, transform_indices = @transform_8, window_bounds = array<i64: 1, 128>}, {pipeline_mode = #tpu.pipeline_mode<synchronous>, transform_indices = @transform_9, window_bounds = array<i64: 1, 128>}, {pipeline_mode = #tpu.pipeline_mode<synchronous>, transform_indices = @transform_10, window_bounds = array<i64: 1, 1>}, {transform_indices = @transform_11, window_bounds = array<i64: 1, 8>}]} {
    %c0 = arith.constant 0 : index
    %c0_0 = arith.constant 0 : index
    %0 = vector.load %arg2[%c0, %c0_0] : memref<8x1xi32, #tpu.memory_space<vmem>>, vector<8x1xi32>
    %1 = tpu.iota {dimensions = array<i32: 1>} : vector<8x128xi32>
    %2 = vector.broadcast %0 : vector<8x1xi32> to vector<8x128xi32>
    %3 = arith.cmpi eq, %2, %1 : vector<8x128xi32>
    %4 = arith.extui %3 : vector<8x128xi1> to vector<8x128xi32>
    %5 = arith.sitofp %4 : vector<8x128xi32> to vector<8x128xf32>
    %6 = arith.truncf %5 : vector<8x128xf32> to vector<8x128xbf16>
    %c0_1 = arith.constant 0 : index
    %c0_2 = arith.constant 0 : index
    %7 = vector.load %arg1[%c0_1, %c0_2] : memref<8x256xf32, #tpu.memory_space<vmem>>, vector<8x256xf32>
    %8 = arith.truncf %7 : vector<8x256xf32> to vector<8x256xbf16>
    %c0_3 = arith.constant 0 : index
    %c0_4 = arith.constant 0 : index
    %9 = vector.load %arg3[%c0_3, %c0_4] : memref<256x128xbf16, #tpu.memory_space<vmem>>, vector<256x128xbf16>
    %cst = arith.constant dense<0.000000e+00> : vector<8x128xf32>
    %10 = tpu.matmul %8, %9, %cst {dimension_numbers = #tpu.dot_dimension_numbers<[1], [0], [0], [1], [0, 0, 1, 1], [], []>} : vector<8x256xbf16>, vector<256x128xbf16>, vector<8x128xf32> -> vector<8x128xf32>
    %c0_5 = arith.constant 0 : index
    %c0_6 = arith.constant 0 : index
    %11 = vector.load %arg4[%c0_5, %c0_6] : memref<128x128xbf16, #tpu.memory_space<vmem>>, vector<128x128xbf16>
    %cst_7 = arith.constant dense<0.000000e+00> : vector<8x128xf32>
    %12 = tpu.matmul %6, %11, %cst_7 {dimension_numbers = #tpu.dot_dimension_numbers<[1], [0], [0], [1], [0, 0, 1, 1], [], []>} : vector<8x128xbf16>, vector<128x128xbf16>, vector<8x128xf32> -> vector<8x128xf32>
    %13 = arith.addf %10, %12 : vector<8x128xf32>
    %c0_8 = arith.constant 0 : index
    %c0_9 = arith.constant 0 : index
    %14 = vector.load %arg5[%c0_8, %c0_9] : memref<1x128xf32, #tpu.memory_space<vmem>>, vector<1x128xf32>
    %15 = vector.broadcast %14 : vector<1x128xf32> to vector<8x128xf32>
    %16 = arith.addf %13, %15 : vector<8x128xf32>
    %cst_10 = arith.constant 2.000000e-01 : f32
    %17 = vector.broadcast %cst_10 : f32 to vector<8x128xf32>
    %18 = arith.mulf %17, %16 : vector<8x128xf32>
    %19 = arith.maximumf %16, %18 : vector<8x128xf32>
    %20 = arith.truncf %19 : vector<8x128xf32> to vector<8x128xbf16>
    %c0_11 = arith.constant 0 : index
    %c0_12 = arith.constant 0 : index
    %21 = vector.load %arg6[%c0_11, %c0_12] : memref<128x128xbf16, #tpu.memory_space<vmem>>, vector<128x128xbf16>
    %cst_13 = arith.constant dense<0.000000e+00> : vector<8x128xf32>
    %22 = tpu.matmul %20, %21, %cst_13 {dimension_numbers = #tpu.dot_dimension_numbers<[1], [0], [0], [1], [0, 0, 1, 1], [], []>} : vector<8x128xbf16>, vector<128x128xbf16>, vector<8x128xf32> -> vector<8x128xf32>
    %c0_14 = arith.constant 0 : index
    %c0_15 = arith.constant 0 : index
    %23 = vector.load %arg7[%c0_14, %c0_15] : memref<1x128xf32, #tpu.memory_space<vmem>>, vector<1x128xf32>
    %24 = vector.broadcast %23 : vector<1x128xf32> to vector<8x128xf32>
    %25 = arith.addf %22, %24 : vector<8x128xf32>
    %cst_16 = arith.constant 2.000000e-01 : f32
    %26 = vector.broadcast %cst_16 : f32 to vector<8x128xf32>
    %27 = arith.mulf %26, %25 : vector<8x128xf32>
    %28 = arith.maximumf %25, %27 : vector<8x128xf32>
    %29 = arith.truncf %28 : vector<8x128xf32> to vector<8x128xbf16>
    %c0_17 = arith.constant 0 : index
    %c0_18 = arith.constant 0 : index
    %30 = vector.load %arg8[%c0_17, %c0_18] : memref<128x128xbf16, #tpu.memory_space<vmem>>, vector<128x128xbf16>
    %cst_19 = arith.constant dense<0.000000e+00> : vector<8x128xf32>
    %31 = tpu.matmul %29, %30, %cst_19 {dimension_numbers = #tpu.dot_dimension_numbers<[1], [0], [0], [1], [0, 0, 1, 1], [], []>} : vector<8x128xbf16>, vector<128x128xbf16>, vector<8x128xf32> -> vector<8x128xf32>
    %c0_20 = arith.constant 0 : index
    %c0_21 = arith.constant 0 : index
    %32 = vector.load %arg9[%c0_20, %c0_21] : memref<1x128xf32, #tpu.memory_space<vmem>>, vector<1x128xf32>
    %33 = vector.broadcast %32 : vector<1x128xf32> to vector<8x128xf32>
    %34 = arith.addf %31, %33 : vector<8x128xf32>
    %cst_22 = arith.constant 2.000000e-01 : f32
    %35 = vector.broadcast %cst_22 : f32 to vector<8x128xf32>
    %36 = arith.mulf %35, %34 : vector<8x128xf32>
    %37 = arith.maximumf %34, %36 : vector<8x128xf32>
    %c0_23 = arith.constant 0 : index
    %c0_24 = arith.constant 0 : index
    %38 = vector.load %arg10[%c0_23, %c0_24] : memref<1x128xbf16, #tpu.memory_space<vmem>>, vector<1x128xbf16>
    %39 = arith.truncf %37 : vector<8x128xf32> to vector<8x128xbf16>
    %40 = tpu.transpose %39, [1, 0] : vector<8x128xbf16> -> vector<128x8xbf16>
    %cst_25 = arith.constant dense<0.000000e+00> : vector<1x8xf32>
    %41 = tpu.matmul %38, %40, %cst_25 {dimension_numbers = #tpu.dot_dimension_numbers<[1], [0], [0], [1], [0, 0, 1, 1], [], []>} : vector<1x128xbf16>, vector<128x8xbf16>, vector<1x8xf32> -> vector<1x8xf32>
    %c0_26 = arith.constant 0 : index
    %c0_27 = arith.constant 0 : index
    %42 = vector.load %arg11[%c0_26, %c0_27] : memref<1x1xf32, #tpu.memory_space<vmem>>, vector<1x1xf32>
    %43 = vector.broadcast %42 : vector<1x1xf32> to vector<1x8xf32>
    %44 = arith.addf %41, %43 : vector<1x8xf32>
    %45 = math.absf %44 : vector<1x8xf32>
    %cst_28 = arith.constant 0.000000e+00 : f32
    %46 = vector.broadcast %cst_28 : f32 to vector<1x8xf32>
    %47 = arith.subf %46, %45 : vector<1x8xf32>
    %48 = math.exp %47 : vector<1x8xf32>
    %cst_29 = arith.constant 1.000000e+00 : f32
    %49 = vector.broadcast %cst_29 : f32 to vector<1x8xf32>
    %50 = arith.addf %49, %48 : vector<1x8xf32>
    %51 = tpu.reciprocal %50 {approx = true} : vector<1x8xf32> -> vector<1x8xf32>
    %cst_30 = arith.constant 0.000000e+00 : f32
    %52 = vector.broadcast %cst_30 : f32 to vector<1x8xf32>
    %53 = arith.cmpf oge, %44, %52 : vector<1x8xf32>
    %54 = arith.mulf %48, %51 : vector<1x8xf32>
    %55 = arith.select %53, %51, %54 : vector<1x8xi1>, vector<1x8xf32>
    %cst_31 = arith.constant 0.000000e+00 : f32
    %cst_32 = arith.constant 1.000000e+00 : f32
    %56 = vector.broadcast %cst_31 : f32 to vector<1x8xf32>
    %57 = arith.maximumf %56, %55 : vector<1x8xf32>
    %58 = vector.broadcast %cst_32 : f32 to vector<1x8xf32>
    %59 = arith.minimumf %58, %57 : vector<1x8xf32>
    %c0_33 = arith.constant 0 : index
    %c0_34 = arith.constant 0 : index
    %60 = vector.load %arg12[%c0_33, %c0_34] : memref<1x8xf32, #tpu.memory_space<vmem>>, vector<1x8xf32>
    tpu.vector_store %arg12[%c0_33, %c0_34], %59 {strides = array<i32>} : memref<1x8xf32, #tpu.memory_space<vmem>>, vector<1x8xf32>,
    return
  }
  func.func @transform_0(%arg0: i32) -> (i32, i32) {
    %c0_i32 = arith.constant 0 : i32
    %c0_i32_0 = arith.constant 0 : i32
    return %arg0, %c0_i32 : i32, i32
  }
  func.func @transform_1(%arg0: i32) -> (i32, i32) {
    %c0_i32 = arith.constant 0 : i32
    %c0_i32_0 = arith.constant 0 : i32
    return %arg0, %c0_i32 : i32, i32
  }
  func.func @transform_2(%arg0: i32) -> (i32, i32) {
    %c0_i32 = arith.constant 0 : i32
    %c0_i32_0 = arith.constant 0 : i32
    %c0_i32_1 = arith.constant 0 : i32
    return %c0_i32, %c0_i32_0 : i32, i32
  }
  func.func @transform_3(%arg0: i32) -> (i32, i32) {
    %c0_i32 = arith.constant 0 : i32
    %c0_i32_0 = arith.constant 0 : i32
    %c0_i32_1 = arith.constant 0 : i32
    return %c0_i32, %c0_i32_0 : i32, i32
  }
  func.func @transform_4(%arg0: i32) -> (i32, i32) {
    %c0_i32 = arith.constant 0 : i32
    %c0_i32_0 = arith.constant 0 : i32
    %c0_i32_1 = arith.constant 0 : i32
    return %c0_i32, %c0_i32_0 : i32, i32
  }
  func.func @transform_5(%arg0: i32) -> (i32, i32) {
    %c0_i32 = arith.constant 0 : i32
    %c0_i32_0 = arith.constant 0 : i32
    %c0_i32_1 = arith.constant 0 : i32
    return %c0_i32, %c0_i32_0 : i32, i32
  }
  func.func @transform_6(%arg0: i32) -> (i32, i32) {
    %c0_i32 = arith.constant 0 : i32
    %c0_i32_0 = arith.constant 0 : i32
    %c0_i32_1 = arith.constant 0 : i32
    return %c0_i32, %c0_i32_0 : i32, i32
  }
  func.func @transform_7(%arg0: i32) -> (i32, i32) {
    %c0_i32 = arith.constant 0 : i32
    %c0_i32_0 = arith.constant 0 : i32
    %c0_i32_1 = arith.constant 0 : i32
    return %c0_i32, %c0_i32_0 : i32, i32
  }
  func.func @transform_8(%arg0: i32) -> (i32, i32) {
    %c0_i32 = arith.constant 0 : i32
    %c0_i32_0 = arith.constant 0 : i32
    %c0_i32_1 = arith.constant 0 : i32
    return %c0_i32, %c0_i32_0 : i32, i32
  }
  func.func @transform_9(%arg0: i32) -> (i32, i32) {
    %c0_i32 = arith.constant 0 : i32
    %c0_i32_0 = arith.constant 0 : i32
    %c0_i32_1 = arith.constant 0 : i32
    return %c0_i32, %c0_i32_0 : i32, i32
  }
  func.func @transform_10(%arg0: i32) -> (i32, i32) {
    %c0_i32 = arith.constant 0 : i32
    %c0_i32_0 = arith.constant 0 : i32
    %c0_i32_1 = arith.constant 0 : i32
    return %c0_i32, %c0_i32_0 : i32, i32
  }
  func.func @transform_11(%arg0: i32) -> (i32, i32) {
    %c0_i32 = arith.constant 0 : i32
    %c0_i32_0 = arith.constant 0 : i32
    return %c0_i32, %arg0 : i32, i32
  }
}

</mosaic_0001>

<llo_original>
// kernel: discriminator_forward.1
$region0: #{discriminator_forward.1}
  #allocation0 [shape = 'u32[]', space=smem, size = 0x4, offset = 0x4, fixed_abs, tag = 'smem constant byte address 0x4 - core index']
  #allocation1 [shape = 'u32[144,128]{1,0:T(1,128)}', space=vmem, size = 0x12000, scoped, tag = 'internal scratch']
  #allocation2 [shape = 'f32[1,1]{1,0:T(1,128)S(1)}', space=vmem, size = 0x200, scoped, tag = 'scoped memory for discriminator_forward.1']
  %s0 = inlined_call_operand.vmem [shape: f32[8,256], index: 0, kind: input, shape index: {}]
  %s1 = inlined_call_operand.vmem [shape: s32[8,1], index: 1, kind: input, shape index: {}]
  %s2 = inlined_call_operand.hbm [shape: bf16[256,128], index: 2, kind: input, shape index: {}]
  %s3 = inlined_call_operand.vmem [shape: bf16[128,128], index: 3, kind: input, shape index: {}]
  %s4 = inlined_call_operand.vmem [shape: f32[1,128], index: 4, kind: input, shape index: {}]
  %s5 = inlined_call_operand.hbm [shape: bf16[128,128], index: 5, kind: input, shape index: {}]
  %s6 = inlined_call_operand.vmem [shape: f32[1,128], index: 6, kind: input, shape index: {}]
  %s7 = inlined_call_operand.hbm [shape: bf16[128,128], index: 7, kind: input, shape index: {}]
  %s8 = inlined_call_operand.vmem [shape: f32[1,128], index: 8, kind: input, shape index: {}]
  %s9 = inlined_call_operand.vmem [shape: bf16[1,128], index: 9, kind: input, shape index: {}]
  %s10 = inlined_call_operand.<no memory space> [shape: f32[1,1], index: 10, kind: input, shape index: {}]
  %s11 = inlined_call_operand.vmem [shape: f32[1,8], index: 11, kind: output, shape index: {}]
  %s12 = sld [smem:[#allocation0]]
  $region66: #{discriminator_forward.1} parent=0
    _
  %s14 = ssub.s32 1, %s12
  %s15 = scalar_select 0, %s14, %s12
  %v16 = vstv %s10
  %17 = vst [vmem:[#allocation2] sm:$0x1] %v16
  $region1: #{discriminator_forward.1} parent=0
    #allocation3 [shape = 'u8[65536]{0}', space=vmem, size = 0x10000, scoped, tag = 'input window, operand 2, single buffered']
    #allocation4 [shape = 's32[1]{0}', space=sflag, size = 0x4, scoped, tag = 'scoped memory for discriminator_forward.1']
    #allocation5 [shape = 'u8[32768]{0}', space=vmem, size = 0x8000, scoped, tag = 'input window, operand 5, single buffered']
    #allocation6 [shape = 's32[1]{0}', space=sflag, size = 0x4, scoped, tag = 'scoped memory for discriminator_forward.1']
    #allocation7 [shape = 'u8[32768]{0}', space=vmem, size = 0x8000, scoped, tag = 'input window, operand 7, single buffered']
    %18 = vsyncpa [#allocation4], 0
    %19 = vsyncpa [#allocation6], 0
    // Predicated region
    $region2: #{discriminator_forward.1} parent=1 // pred_check
      _
    $region3: #{discriminator_forward.1} parent=1 // pred_check_branch
      %21 = sbr.rel (0) target = $region5
    $region4: #{discriminator_forward.1} parent=1 // pred_region
      _
    $region5: #{discriminator_forward.1} parent=1 // pred_fallthru
      _
    // Predicated region
    $region6: #{discriminator_forward.1} parent=1 // pred_check
      _
    $region7: #{discriminator_forward.1} parent=1 // pred_check_branch
      %23 = sbr.rel (0) target = $region9
    $region8: #{discriminator_forward.1} parent=1 // pred_region
      _
    $region9: #{discriminator_forward.1} parent=1 // pred_fallthru
      _
    // Predicated region
    $region10: #{discriminator_forward.1} parent=1 // pred_check
      _
    $region11: #{discriminator_forward.1} parent=1 // pred_check_branch
      %25 = sbr.rel (0) target = $region13
    $region12: #{discriminator_forward.1} parent=1 // pred_region
      %s27 = ssub.s32 2048, 2048
      %28 = vsyncadd [#allocation4], %s27
      %s29 = sshll.u32 [#allocation3], 4
      %s30 = int_to_ptr.vmem [resolvable:$true] %s29
      %35 = dma.hbm_to_vmem [thread:$0]  %s2, 2048, %s30, [#allocation4], 64, 64, 4
    $region13: #{discriminator_forward.1} parent=1 // pred_fallthru
      _
    // Predicated region
    $region14: #{discriminator_forward.1} parent=1 // pred_check
      _
    $region15: #{discriminator_forward.1} parent=1 // pred_check_branch
      %37 = sbr.rel (0) target = $region17
    $region16: #{discriminator_forward.1} parent=1 // pred_region
      _
    $region17: #{discriminator_forward.1} parent=1 // pred_fallthru
      _
    // Predicated region
    $region18: #{discriminator_forward.1} parent=1 // pred_check
      _
    $region19: #{discriminator_forward.1} parent=1 // pred_check_branch
      %39 = sbr.rel (0) target = $region21
    $region20: #{discriminator_forward.1} parent=1 // pred_region
      _
    $region21: #{discriminator_forward.1} parent=1 // pred_fallthru
      _
    // Predicated region
    $region22: #{discriminator_forward.1} parent=1 // pred_check
      _
    $region23: #{discriminator_forward.1} parent=1 // pred_check_branch
      %41 = sbr.rel (0) target = $region25
    $region24: #{discriminator_forward.1} parent=1 // pred_region
      %s43 = ssub.s32 1024, 1024
      %44 = vsyncadd [#allocation6], %s43
      %s45 = sshll.u32 [#allocation5], 4
      %s46 = int_to_ptr.vmem [resolvable:$true] %s45
      %51 = dma.hbm_to_vmem [thread:$0]  %s5, 1024, %s46, [#allocation6], 64, 64, 4
    $region25: #{discriminator_forward.1} parent=1 // pred_fallthru
      _
    // Predicated region
    $region26: #{discriminator_forward.1} parent=1 // pred_check
      _
    $region27: #{discriminator_forward.1} parent=1 // pred_check_branch
      %53 = sbr.rel (0) target = $region29
    $region28: #{discriminator_forward.1} parent=1 // pred_region
      _
    $region29: #{discriminator_forward.1} parent=1 // pred_fallthru
      _
    // Predicated region
    $region30: #{discriminator_forward.1} parent=1 // pred_check
      _
    $region31: #{discriminator_forward.1} parent=1 // pred_check_branch
      %55 = sbr.rel (0) target = $region33
    $region32: #{discriminator_forward.1} parent=1 // pred_region
      %s57 = ssub.s32 1024, 1024
      %58 = vsyncadd [#allocation6], %s57
      %s59 = sshll.u32 [#allocation7], 4
      %s60 = int_to_ptr.vmem [resolvable:$true] %s59
      %65 = dma.hbm_to_vmem [thread:$0]  %s7, 1024, %s60, [#allocation6], 64, 64, 4
    $region33: #{discriminator_forward.1} parent=1 // pred_fallthru
      _
    // Predicated region
    $region34: #{discriminator_forward.1} parent=1 // pred_check
      _
    $region35: #{discriminator_forward.1} parent=1 // pred_check_branch
      %67 = sbr.rel (0) target = $region37
    $region36: #{discriminator_forward.1} parent=1 // pred_region
      _
    $region37: #{discriminator_forward.1} parent=1 // pred_fallthru
      _
    // Predicated region
    $region38: #{discriminator_forward.1} parent=1 // pred_check
      _
    $region39: #{discriminator_forward.1} parent=1 // pred_check_branch
      %69 = sbr.rel (0) target = $region41
    $region40: #{discriminator_forward.1} parent=1 // pred_region
      _
    $region41: #{discriminator_forward.1} parent=1 // pred_fallthru
      _
    // Predicated region
    $region42: #{discriminator_forward.1} parent=1 // pred_check
      _
    $region43: #{discriminator_forward.1} parent=1 // pred_check_branch
      %71 = sbr.rel (0) target = $region45
    $region44: #{discriminator_forward.1} parent=1 // pred_region
      _
    $region45: #{discriminator_forward.1} parent=1 // pred_fallthru
      _
    // Predicated region
    $region46: #{discriminator_forward.1} parent=1 // pred_check
      _
    $region47: #{discriminator_forward.1} parent=1 // pred_check_branch
      %73 = sbr.rel (0) target = $region49
    $region48: #{discriminator_forward.1} parent=1 // pred_region
      %74 = dma.done [#allocation4], 2048
    $region49: #{discriminator_forward.1} parent=1 // pred_fallthru
      _
    // Predicated region
    $region50: #{discriminator_forward.1} parent=1 // pred_check
      _
    $region51: #{discriminator_forward.1} parent=1 // pred_check_branch
      %76 = sbr.rel (0) target = $region53
    $region52: #{discriminator_forward.1} parent=1 // pred_region
      %77 = dma.done [#allocation6], 1024
    $region53: #{discriminator_forward.1} parent=1 // pred_fallthru
      _
    // Predicated region
    $region54: #{discriminator_forward.1} parent=1 // pred_check
      _
    $region55: #{discriminator_forward.1} parent=1 // pred_check_branch
      %79 = sbr.rel (0) target = $region57
    $region56: #{discriminator_forward.1} parent=1 // pred_region
      %80 = dma.done [#allocation6], 1024
    $region57: #{discriminator_forward.1} parent=1 // pred_fallthru
      _
    %v82 = vld [vmem:[%s1] sm:$0xff]
    %v83 = vlaneseq
    %v84 = vand.u32 %v83, 127
    %85 = vset.pattern.permute.xlu0 0
    %86 = vperm.xlu0 %85, %v82
    %v87 = vpop.permute.xlu0 %86
    %vm88 = vcmp.eq.s32.totalorder %v87, %v84
    %v89 = vsel %vm88, 1, 0
    %v90 = vcvt.s32.f32 %v89
    %v91 = vpack.c.bf16 %v90, %v90
    %v92 = vld [vmem:[%s0] sm:$0xff]
    %v93 = vld [vmem:[%s0 + $0x8] sm:$0xff]
    %v94 = vpack.c.bf16 %v92, %v92
    %v95 = vpack.c.bf16 %v93, %v93
    %v96 = vld [vmem:[#allocation3] sm:$0xf]
    %v97 = vld [vmem:[#allocation3 + $0x4] sm:$0xf]
    %v98 = vld [vmem:[#allocation3 + $0x8] sm:$0xf]
    %v99 = vld [vmem:[#allocation3 + $0xc] sm:$0xf]
    %v100 = vld [vmem:[#allocation3 + $0x10] sm:$0xf]
    %v101 = vld [vmem:[#allocation3 + $0x14] sm:$0xf]
    %v102 = vld [vmem:[#allocation3 + $0x18] sm:$0xf]
    %v103 = vld [vmem:[#allocation3 + $0x1c] sm:$0xf]
    %v104 = vld [vmem:[#allocation3 + $0x20] sm:$0xf]
    %v105 = vld [vmem:[#allocation3 + $0x24] sm:$0xf]
    %v106 = vld [vmem:[#allocation3 + $0x28] sm:$0xf]
    %v107 = vld [vmem:[#allocation3 + $0x2c] sm:$0xf]
    %v108 = vld [vmem:[#allocation3 + $0x30] sm:$0xf]
    %v109 = vld [vmem:[#allocation3 + $0x34] sm:$0xf]
    %v110 = vld [vmem:[#allocation3 + $0x38] sm:$0xf]
    %v111 = vld [vmem:[#allocation3 + $0x3c] sm:$0xf]
    %v112 = vld [vmem:[#allocation3 + $0x40] sm:$0xf]
    %v113 = vld [vmem:[#allocation3 + $0x44] sm:$0xf]
    %v114 = vld [vmem:[#allocation3 + $0x48] sm:$0xf]
    %v115 = vld [vmem:[#allocation3 + $0x4c] sm:$0xf]
    %v116 = vld [vmem:[#allocation3 + $0x50] sm:$0xf]
    %v117 = vld [vmem:[#allocation3 + $0x54] sm:$0xf]
    %v118 = vld [vmem:[#allocation3 + $0x58] sm:$0xf]
    %v119 = vld [vmem:[#allocation3 + $0x5c] sm:$0xf]
    %v120 = vld [vmem:[#allocation3 + $0x60] sm:$0xf]
    %v121 = vld [vmem:[#allocation3 + $0x64] sm:$0xf]
    %v122 = vld [vmem:[#allocation3 + $0x68] sm:$0xf]
    %v123 = vld [vmem:[#allocation3 + $0x6c] sm:$0xf]
    %v124 = vld [vmem:[#allocation3 + $0x70] sm:$0xf]
    %v125 = vld [vmem:[#allocation3 + $0x74] sm:$0xf]
    %v126 = vld [vmem:[#allocation3 + $0x78] sm:$0xf]
    %v127 = vld [vmem:[#allocation3 + $0x7c] sm:$0xf]
    %v128 = vld [vmem:[%s3] sm:$0xf]
    %v129 = vld [vmem:[%s3 + $0x4] sm:$0xf]
    %v130 = vld [vmem:[%s3 + $0x8] sm:$0xf]
    %v131 = vld [vmem:[%s3 + $0xc] sm:$0xf]
    %v132 = vld [vmem:[%s3 + $0x10] sm:$0xf]
    %v133 = vld [vmem:[%s3 + $0x14] sm:$0xf]
    %v134 = vld [vmem:[%s3 + $0x18] sm:$0xf]
    %v135 = vld [vmem:[%s3 + $0x1c] sm:$0xf]
    %v136 = vld [vmem:[%s3 + $0x20] sm:$0xf]
    %v137 = vld [vmem:[%s3 + $0x24] sm:$0xf]
    %v138 = vld [vmem:[%s3 + $0x28] sm:$0xf]
    %v139 = vld [vmem:[%s3 + $0x2c] sm:$0xf]
    %v140 = vld [vmem:[%s3 + $0x30] sm:$0xf]
    %v141 = vld [vmem:[%s3 + $0x34] sm:$0xf]
    %v142 = vld [vmem:[%s3 + $0x38] sm:$0xf]
    %v143 = vld [vmem:[%s3 + $0x3c] sm:$0xf]
    %v160 = vunpack.c.l.b16 %v128
    %v161 = vunpack.c.l.b16 %v129
    %v162 = vunpack.c.l.b16 %v130
    %v163 = vunpack.c.l.b16 %v131
    %v164 = vunpack.c.l.b16 %v132
    %v165 = vunpack.c.l.b16 %v133
    %v166 = vunpack.c.l.b16 %v134
    %v167 = vunpack.c.l.b16 %v135
    %v168 = vunpack.c.l.b16 %v136
    %v169 = vunpack.c.l.b16 %v137
    %v170 = vunpack.c.l.b16 %v138
    %v171 = vunpack.c.l.b16 %v139
    %v172 = vunpack.c.l.b16 %v140
    %v173 = vunpack.c.l.b16 %v141
    %v174 = vunpack.c.l.b16 %v142
    %v175 = vunpack.c.l.b16 %v143
    %v176 = vpack.c.b16 %v161, %v160
    %v177 = vpack.c.b16 %v163, %v162
    %v178 = vpack.c.b16 %v165, %v164
    %v179 = vpack.c.b16 %v167, %v166
    %v180 = vpack.c.b16 %v169, %v168
    %v181 = vpack.c.b16 %v171, %v170
    %v182 = vpack.c.b16 %v173, %v172
    %v183 = vpack.c.b16 %v175, %v174
    %192 = vmatprep.subr.bf16.mxu0 0
    %193 = vmatpush1.bf16.msra.mxu0 %v176
    %194 = vmatprep.subr.bf16.mxu0 0
    %195 = vmatpush1.bf16.msra.mxu0 %v177
    %196 = vmatprep.subr.bf16.mxu0 0
    %197 = vmatpush1.bf16.msra.mxu0 %v178
    %198 = vmatprep.subr.bf16.mxu0 0
    %199 = vmatpush1.bf16.msra.mxu0 %v179
    %200 = vmatprep.subr.bf16.mxu0 0
    %201 = vmatpush1.bf16.msra.mxu0 %v180
    %202 = vmatprep.subr.bf16.mxu0 0
    %203 = vmatpush1.bf16.msra.mxu0 %v181
    %204 = vmatprep.subr.bf16.mxu0 0
    %205 = vmatpush1.bf16.msra.mxu0 %v182
    %206 = vmatprep.subr.bf16.mxu0 0
    %207 = vmatpush1.bf16.msra.mxu0 %v183
    %208 = vmatprep.subr.bf16.mxu0 0
    %209 = vmatpush1.bf16.msra.mxu0 0
    %210 = vmatprep.subr.bf16.mxu0 0
    %211 = vmatpush1.bf16.msra.mxu0 0
    %212 = vmatprep.subr.bf16.mxu0 0
    %213 = vmatpush1.bf16.msra.mxu0 0
    %214 = vmatprep.subr.bf16.mxu0 0
    %215 = vmatpush1.bf16.msra.mxu0 0
    %216 = vmatprep.subr.bf16.mxu0 0
    %217 = vmatpush1.bf16.msra.mxu0 0
    %218 = vmatprep.subr.bf16.mxu0 0
    %219 = vmatpush1.bf16.msra.mxu0 0
    %220 = vmatprep.subr.bf16.mxu0 0
    %221 = vmatpush1.bf16.msra.mxu0 0
    %222 = vmatprep.subr.bf16.mxu0 0
    %223 = vmatpush1.bf16.msra.mxu0 0
    %224 = vmatprep.mubr.bf16.mxu0 0
    %225 = vmatmul.mubr.bf16.gmra.mrb[0].mxu0 %v91
    %v226 = vpop.f32.mrb[0].mxu0
    %v227 = vadd.f32 0.0, %v226
    %v228 = vpop.f32.mrb[0].mxu0
    %v229 = vpop.f32.mrb[0].mxu0
    %v230 = vpop.f32.mrb[0].mxu0
    %231 = vdwg.mxu0
    %v264 = vunpack.c.l.b16 %v96
    %v265 = vunpack.c.l.b16 %v97
    %v266 = vunpack.c.l.b16 %v98
    %v267 = vunpack.c.l.b16 %v99
    %v268 = vunpack.c.l.b16 %v100
    %v269 = vunpack.c.l.b16 %v101
    %v270 = vunpack.c.l.b16 %v102
    %v271 = vunpack.c.l.b16 %v103
    %v272 = vunpack.c.l.b16 %v104
    %v273 = vunpack.c.l.b16 %v105
    %v274 = vunpack.c.l.b16 %v106
    %v275 = vunpack.c.l.b16 %v107
    %v276 = vunpack.c.l.b16 %v108
    %v277 = vunpack.c.l.b16 %v109
    %v278 = vunpack.c.l.b16 %v110
    %v279 = vunpack.c.l.b16 %v111
    %v280 = vunpack.c.l.b16 %v112
    %v281 = vunpack.c.l.b16 %v113
    %v282 = vunpack.c.l.b16 %v114
    %v283 = vunpack.c.l.b16 %v115
    %v284 = vunpack.c.l.b16 %v116
    %v285 = vunpack.c.l.b16 %v117
    %v286 = vunpack.c.l.b16 %v118
    %v287 = vunpack.c.l.b16 %v119
    %v288 = vunpack.c.l.b16 %v120
    %v289 = vunpack.c.l.b16 %v121
    %v290 = vunpack.c.l.b16 %v122
    %v291 = vunpack.c.l.b16 %v123
    %v292 = vunpack.c.l.b16 %v124
    %v293 = vunpack.c.l.b16 %v125
    %v294 = vunpack.c.l.b16 %v126
    %v295 = vunpack.c.l.b16 %v127
    %v296 = vpack.c.b16 %v265, %v264
    %v297 = vpack.c.b16 %v267, %v266
    %v298 = vpack.c.b16 %v269, %v268
    %v299 = vpack.c.b16 %v271, %v270
    %v300 = vpack.c.b16 %v273, %v272
    %v301 = vpack.c.b16 %v275, %v274
    %v302 = vpack.c.b16 %v277, %v276
    %v303 = vpack.c.b16 %v279, %v278
    %v304 = vpack.c.b16 %v281, %v280
    %v305 = vpack.c.b16 %v283, %v282
    %v306 = vpack.c.b16 %v285, %v284
    %v307 = vpack.c.b16 %v287, %v286
    %v308 = vpack.c.b16 %v289, %v288
    %v309 = vpack.c.b16 %v291, %v290
    %v310 = vpack.c.b16 %v293, %v292
    %v311 = vpack.c.b16 %v295, %v294
    %328 = vmatprep.subr.bf16.mxu0 0
    %329 = vmatpush1.bf16.msra.mxu0 %v296
    %330 = vmatprep.subr.bf16.mxu0 0
    %331 = vmatpush1.bf16.msra.mxu0 %v297
    %332 = vmatprep.subr.bf16.mxu0 0
    %333 = vmatpush1.bf16.msra.mxu0 %v298
    %334 = vmatprep.subr.bf16.mxu0 0
    %335 = vmatpush1.bf16.msra.mxu0 %v299
    %336 = vmatprep.subr.bf16.mxu0 0
    %337 = vmatpush1.bf16.msra.mxu0 %v300
    %338 = vmatprep.subr.bf16.mxu0 0
    %339 = vmatpush1.bf16.msra.mxu0 %v301
    %340 = vmatprep.subr.bf16.mxu0 0
    %341 = vmatpush1.bf16.msra.mxu0 %v302
    %342 = vmatprep.subr.bf16.mxu0 0
    %343 = vmatpush1.bf16.msra.mxu0 %v303
    %344 = vmatprep.subr.bf16.mxu0 0
    %345 = vmatpush1.bf16.msra.mxu0 %v304
    %346 = vmatprep.subr.bf16.mxu0 0
    %347 = vmatpush1.bf16.msra.mxu0 %v305
    %348 = vmatprep.subr.bf16.mxu0 0
    %349 = vmatpush1.bf16.msra.mxu0 %v306
    %350 = vmatprep.subr.bf16.mxu0 0
    %351 = vmatpush1.bf16.msra.mxu0 %v307
    %352 = vmatprep.subr.bf16.mxu0 0
    %353 = vmatpush1.bf16.msra.mxu0 %v308
    %354 = vmatprep.subr.bf16.mxu0 0
    %355 = vmatpush1.bf16.msra.mxu0 %v309
    %356 = vmatprep.subr.bf16.mxu0 0
    %357 = vmatpush1.bf16.msra.mxu0 %v310
    %358 = vmatprep.subr.bf16.mxu0 0
    %359 = vmatpush1.bf16.msra.mxu0 %v311
    %360 = vmatprep.mubr.bf16.mxu0 %v95
    %361 = vmatmul.mubr.bf16.gmra.mrb[0].mxu0 %v94
    %v362 = vpop.f32.mrb[0].mxu0
    %v363 = vadd.f32 %v227, %v362
    %v364 = vpop.f32.mrb[0].mxu0
    %v365 = vpop.f32.mrb[0].mxu0
    %v366 = vpop.f32.mrb[0].mxu0
    %367 = vdwg.mxu0
    %v368 = vld [vmem:[%s4] sm:$0x1]
    %v370 = vlaneseq
    %v371 = vshrl.u32 %v370, 7
    %v372 = vsub.s32 0, %v371
    %v373 = vrot.slane %v368, %v372
    %v375 = vadd.f32 %v363, %v373
    %v376 = vmul.f32 %v375, 0.2
    %v377 = vmax.f32 %v375, %v376
    %v378 = vpack.c.bf16 %v377, %v377
    %v379 = vld [vmem:[#allocation5] sm:$0xf]
    %v380 = vld [vmem:[#allocation5 + $0x4] sm:$0xf]
    %v381 = vld [vmem:[#allocation5 + $0x8] sm:$0xf]
    %v382 = vld [vmem:[#allocation5 + $0xc] sm:$0xf]
    %v383 = vld [vmem:[#allocation5 + $0x10] sm:$0xf]
    %v384 = vld [vmem:[#allocation5 + $0x14] sm:$0xf]
    %v385 = vld [vmem:[#allocation5 + $0x18] sm:$0xf]
    %v386 = vld [vmem:[#allocation5 + $0x1c] sm:$0xf]
    %v387 = vld [vmem:[#allocation5 + $0x20] sm:$0xf]
    %v388 = vld [vmem:[#allocation5 + $0x24] sm:$0xf]
    %v389 = vld [vmem:[#allocation5 + $0x28] sm:$0xf]
    %v390 = vld [vmem:[#allocation5 + $0x2c] sm:$0xf]
    %v391 = vld [vmem:[#allocation5 + $0x30] sm:$0xf]
    %v392 = vld [vmem:[#allocation5 + $0x34] sm:$0xf]
    %v393 = vld [vmem:[#allocation5 + $0x38] sm:$0xf]
    %v394 = vld [vmem:[#allocation5 + $0x3c] sm:$0xf]
    %v395 = vld [vmem:[%s6] sm:$0x1]
    %v397 = vlaneseq
    %v398 = vshrl.u32 %v397, 7
    %v399 = vsub.s32 0, %v398
    %v400 = vrot.slane %v395, %v399
    %v418 = vunpack.c.l.b16 %v379
    %v419 = vunpack.c.l.b16 %v380
    %v420 = vunpack.c.l.b16 %v381
    %v421 = vunpack.c.l.b16 %v382
    %v422 = vunpack.c.l.b16 %v383
    %v423 = vunpack.c.l.b16 %v384
    %v424 = vunpack.c.l.b16 %v385
    %v425 = vunpack.c.l.b16 %v386
    %v426 = vunpack.c.l.b16 %v387
    %v427 = vunpack.c.l.b16 %v388
    %v428 = vunpack.c.l.b16 %v389
    %v429 = vunpack.c.l.b16 %v390
    %v430 = vunpack.c.l.b16 %v391
    %v431 = vunpack.c.l.b16 %v392
    %v432 = vunpack.c.l.b16 %v393
    %v433 = vunpack.c.l.b16 %v394
    %v434 = vpack.c.b16 %v419, %v418
    %v435 = vpack.c.b16 %v421, %v420
    %v436 = vpack.c.b16 %v423, %v422
    %v437 = vpack.c.b16 %v425, %v424
    %v438 = vpack.c.b16 %v427, %v426
    %v439 = vpack.c.b16 %v429, %v428
    %v440 = vpack.c.b16 %v431, %v430
    %v441 = vpack.c.b16 %v433, %v432
    %450 = vmatprep.subr.bf16.mxu0 0
    %451 = vmatpush1.bf16.msra.mxu0 %v434
    %452 = vmatprep.subr.bf16.mxu0 0
    %453 = vmatpush1.bf16.msra.mxu0 %v435
    %454 = vmatprep.subr.bf16.mxu0 0
    %455 = vmatpush1.bf16.msra.mxu0 %v436
    %456 = vmatprep.subr.bf16.mxu0 0
    %457 = vmatpush1.bf16.msra.mxu0 %v437
    %458 = vmatprep.subr.bf16.mxu0 0
    %459 = vmatpush1.bf16.msra.mxu0 %v438
    %460 = vmatprep.subr.bf16.mxu0 0
    %461 = vmatpush1.bf16.msra.mxu0 %v439
    %462 = vmatprep.subr.bf16.mxu0 0
    %463 = vmatpush1.bf16.msra.mxu0 %v440
    %464 = vmatprep.subr.bf16.mxu0 0
    %465 = vmatpush1.bf16.msra.mxu0 %v441
    %466 = vmatprep.subr.bf16.mxu0 0
    %467 = vmatpush1.bf16.msra.mxu0 0
    %468 = vmatprep.subr.bf16.mxu0 0
    %469 = vmatpush1.bf16.msra.mxu0 0
    %470 = vmatprep.subr.bf16.mxu0 0
    %471 = vmatpush1.bf16.msra.mxu0 0
    %472 = vmatprep.subr.bf16.mxu0 0
    %473 = vmatpush1.bf16.msra.mxu0 0
    %474 = vmatprep.subr.bf16.mxu0 0
    %475 = vmatpush1.bf16.msra.mxu0 0
    %476 = vmatprep.subr.bf16.mxu0 0
    %477 = vmatpush1.bf16.msra.mxu0 0
    %478 = vmatprep.subr.bf16.mxu0 0
    %479 = vmatpush1.bf16.msra.mxu0 0
    %480 = vmatprep.subr.bf16.mxu0 0
    %481 = vmatpush1.bf16.msra.mxu0 0
    %482 = vmatprep.mubr.bf16.mxu0 0
    %483 = vmatmul.mubr.bf16.gmra.mrb[0].mxu0 %v378
    %v484 = vpop.f32.mrb[0].mxu0
    %v485 = vadd.f32 %v400, %v484
    %v486 = vpop.f32.mrb[0].mxu0
    %v487 = vpop.f32.mrb[0].mxu0
    %v488 = vpop.f32.mrb[0].mxu0
    %489 = vdwg.mxu0
    %v490 = vmul.f32 %v485, 0.2
    %v491 = vmax.f32 %v485, %v490
    %v492 = vpack.c.bf16 %v491, %v491
    %v493 = vld [vmem:[#allocation7] sm:$0xf]
    %v494 = vld [vmem:[#allocation7 + $0x4] sm:$0xf]
    %v495 = vld [vmem:[#allocation7 + $0x8] sm:$0xf]
    %v496 = vld [vmem:[#allocation7 + $0xc] sm:$0xf]
    %v497 = vld [vmem:[#allocation7 + $0x10] sm:$0xf]
    %v498 = vld [vmem:[#allocation7 + $0x14] sm:$0xf]
    %v499 = vld [vmem:[#allocation7 + $0x18] sm:$0xf]
    %v500 = vld [vmem:[#allocation7 + $0x1c] sm:$0xf]
    %v501 = vld [vmem:[#allocation7 + $0x20] sm:$0xf]
    %v502 = vld [vmem:[#allocation7 + $0x24] sm:$0xf]
    %v503 = vld [vmem:[#allocation7 + $0x28] sm:$0xf]
    %v504 = vld [vmem:[#allocation7 + $0x2c] sm:$0xf]
    %v505 = vld [vmem:[#allocation7 + $0x30] sm:$0xf]
    %v506 = vld [vmem:[#allocation7 + $0x34] sm:$0xf]
    %v507 = vld [vmem:[#allocation7 + $0x38] sm:$0xf]
    %v508 = vld [vmem:[#allocation7 + $0x3c] sm:$0xf]
    %v509 = vld [vmem:[%s8] sm:$0x1]
    %v511 = vlaneseq
    %v512 = vshrl.u32 %v511, 7
    %v513 = vsub.s32 0, %v512
    %v514 = vrot.slane %v509, %v513
    %v532 = vunpack.c.l.b16 %v493
    %v533 = vunpack.c.l.b16 %v494
    %v534 = vunpack.c.l.b16 %v495
    %v535 = vunpack.c.l.b16 %v496
    %v536 = vunpack.c.l.b16 %v497
    %v537 = vunpack.c.l.b16 %v498
    %v538 = vunpack.c.l.b16 %v499
    %v539 = vunpack.c.l.b16 %v500
    %v540 = vunpack.c.l.b16 %v501
    %v541 = vunpack.c.l.b16 %v502
    %v542 = vunpack.c.l.b16 %v503
    %v543 = vunpack.c.l.b16 %v504
    %v544 = vunpack.c.l.b16 %v505
    %v545 = vunpack.c.l.b16 %v506
    %v546 = vunpack.c.l.b16 %v507
    %v547 = vunpack.c.l.b16 %v508
    %v548 = vpack.c.b16 %v533, %v532
    %v549 = vpack.c.b16 %v535, %v534
    %v550 = vpack.c.b16 %v537, %v536
    %v551 = vpack.c.b16 %v539, %v538
    %v552 = vpack.c.b16 %v541, %v540
    %v553 = vpack.c.b16 %v543, %v542
    %v554 = vpack.c.b16 %v545, %v544
    %v555 = vpack.c.b16 %v547, %v546
    %564 = vmatprep.subr.bf16.mxu0 0
    %565 = vmatpush1.bf16.msra.mxu0 %v548
    %566 = vmatprep.subr.bf16.mxu0 0
    %567 = vmatpush1.bf16.msra.mxu0 %v549
    %568 = vmatprep.subr.bf16.mxu0 0
    %569 = vmatpush1.bf16.msra.mxu0 %v550
    %570 = vmatprep.subr.bf16.mxu0 0
    %571 = vmatpush1.bf16.msra.mxu0 %v551
    %572 = vmatprep.subr.bf16.mxu0 0
    %573 = vmatpush1.bf16.msra.mxu0 %v552
    %574 = vmatprep.subr.bf16.mxu0 0
    %575 = vmatpush1.bf16.msra.mxu0 %v553
    %576 = vmatprep.subr.bf16.mxu0 0
    %577 = vmatpush1.bf16.msra.mxu0 %v554
    %578 = vmatprep.subr.bf16.mxu0 0
    %579 = vmatpush1.bf16.msra.mxu0 %v555
    %580 = vmatprep.subr.bf16.mxu0 0
    %581 = vmatpush1.bf16.msra.mxu0 0
    %582 = vmatprep.subr.bf16.mxu0 0
    %583 = vmatpush1.bf16.msra.mxu0 0
    %584 = vmatprep.subr.bf16.mxu0 0
    %585 = vmatpush1.bf16.msra.mxu0 0
    %586 = vmatprep.subr.bf16.mxu0 0
    %587 = vmatpush1.bf16.msra.mxu0 0
    %588 = vmatprep.subr.bf16.mxu0 0
    %589 = vmatpush1.bf16.msra.mxu0 0
    %590 = vmatprep.subr.bf16.mxu0 0
    %591 = vmatpush1.bf16.msra.mxu0 0
    %592 = vmatprep.subr.bf16.mxu0 0
    %593 = vmatpush1.bf16.msra.mxu0 0
    %594 = vmatprep.subr.bf16.mxu0 0
    %595 = vmatpush1.bf16.msra.mxu0 0
    %596 = vmatprep.mubr.bf16.mxu0 0
    %597 = vmatmul.mubr.bf16.gmra.mrb[0].mxu0 %v492
    %v598 = vpop.f32.mrb[0].mxu0
    %v599 = vadd.f32 %v514, %v598
    %v600 = vpop.f32.mrb[0].mxu0
    %v601 = vpop.f32.mrb[0].mxu0
    %v602 = vpop.f32.mrb[0].mxu0
    %603 = vdwg.mxu0
    %v604 = vmul.f32 %v599, 0.2
    %v605 = vmax.f32 %v599, %v604
    %v606 = vld [vmem:[%s9] sm:$0x1]
    %v607 = vpack.c.bf16 %v605, %v605
    %v608 = vld [vmem:[#allocation2] sm:$0x1]
    %610 = vset.pattern.permute.xlu0 0
    %611 = vperm.xlu0 %610, %v608
    %v612 = vpop.permute.xlu0 %611
    %v614 = vlaneseq
    %v615 = vshrl.u32 %v614, 7
    %v616 = vsub.s32 0, %v615
    %v617 = vrot.slane %v612, %v616
    %618 = vmatprep.subr.bf16.mxu0 0
    %619 = vmatpush1.bf16.xpose.msra.mxu0 %v607
    %620 = vmatprep.subr.bf16.mxu0 0
    %621 = vmatpush1.bf16.xpose.msra.mxu0 0
    %622 = vmatprep.subr.bf16.mxu0 0
    %623 = vmatpush1.bf16.xpose.msra.mxu0 0
    %624 = vmatprep.subr.bf16.mxu0 0
    %625 = vmatpush1.bf16.xpose.msra.mxu0 0
    %626 = vmatprep.subr.bf16.mxu0 0
    %627 = vmatpush1.bf16.xpose.msra.mxu0 0
    %628 = vmatprep.subr.bf16.mxu0 0
    %629 = vmatpush1.bf16.xpose.msra.mxu0 0
    %630 = vmatprep.subr.bf16.mxu0 0
    %631 = vmatpush1.bf16.xpose.msra.mxu0 0
    %632 = vmatprep.subr.bf16.mxu0 0
    %633 = vmatpush1.bf16.xpose.msra.mxu0 0
    %634 = vmatprep.subr.bf16.mxu0 0
    %635 = vmatpush1.bf16.xpose.msra.mxu0 0
    %636 = vmatprep.subr.bf16.mxu0 0
    %637 = vmatpush1.bf16.xpose.msra.mxu0 0
    %638 = vmatprep.subr.bf16.mxu0 0
    %639 = vmatpush1.bf16.xpose.msra.mxu0 0
    %640 = vmatprep.subr.bf16.mxu0 0
    %641 = vmatpush1.bf16.xpose.msra.mxu0 0
    %642 = vmatprep.subr.bf16.mxu0 0
    %643 = vmatpush1.bf16.xpose.msra.mxu0 0
    %644 = vmatprep.subr.bf16.mxu0 0
    %645 = vmatpush1.bf16.xpose.msra.mxu0 0
    %646 = vmatprep.subr.bf16.mxu0 0
    %647 = vmatpush1.bf16.xpose.msra.mxu0 0
    %648 = vmatprep.subr.bf16.mxu0 0
    %649 = vmatpush1.bf16.xpose.msra.mxu0 0
    %650 = vmatprep.mubr.bf16.mxu0 0
    %651 = vmatmul.mubr.bf16.gmra.mrb[0].mxu0 %v606
    %v652 = vpop.f32.mrb[0].mxu0
    %v653 = vadd.f32 %v617, %v652
    %v654 = vpop.f32.mrb[0].mxu0
    %v655 = vpop.f32.mrb[0].mxu0
    %v656 = vpop.f32.mrb[0].mxu0
    %657 = vdwg.mxu0
    %v658 = vand.u32 2147483647, %v653
    %v659 = vsub.f32 0.0, %v658
    %v660 = vmul.f32 %v659, 1.442695
    %v661 = vpow.pop %v660
    %v662 = vadd.f32 %v661, 1.0
    %v663 = vrcp.pop %v662
    %vm664 = vcmp.ge.f32.partialorder %v653, 0.0
    %v665 = vmul.f32 %v661, %v663
    %v666 = vsel %vm664, %v663, %v665
    %v667 = vmax.f32 %v666, 0.0
    %v668 = vmin.f32 %v667, 1.0
    %vm669 = vcmask 57344
    %670 = vst.msk [vmem:[%s11] sm:$0x1] %vm669, %v668
    // Predicated region
    $region58: #{discriminator_forward.1} parent=1 // pred_check
      _
    $region59: #{discriminator_forward.1} parent=1 // pred_check_branch
      %672 = sbr.rel (0) target = $region61
    $region60: #{discriminator_forward.1} parent=1 // pred_region
      _
    $region61: #{discriminator_forward.1} parent=1 // pred_fallthru
      _
    // Predicated region
    $region62: #{discriminator_forward.1} parent=1 // pred_check
      _
    $region63: #{discriminator_forward.1} parent=1 // pred_check_branch
      %674 = sbr.rel (0) target = $region65
    $region64: #{discriminator_forward.1} parent=1 // pred_region
      _
    $region65: #{discriminator_forward.1} parent=1 // pred_fallthru
      _
    %675 = vsyncpa [#allocation4], 1
    %676 = vsyncpa [#allocation6], 1

</llo_original>
